<compile_context>
chip_gen: v5e
topology: v5e:2x2
jax: 0.10.0
libtpu: 0.0.40
codegen_flags: <defaults>
</compile_context>

<pallas_src>
import functools
import math

import numpy as np
import jax
import jax.numpy as jnp
from jax import lax
from jax.experimental import pallas as pl
from jax.experimental.pallas import tpu as pltpu

EPS = 1e-5
LANE = 128          # lane width: conv Cout padded 64 -> 128 for lane-dense stores
DEF_TILE_M = 256    # GEMM rows per grid step (comfortably inside v7x 64 MiB VMEM)


def _round_up(x, m):
    return ((x + m - 1) // m) * m


# ---------------------------- Pallas kernels --------------------------------

def mm_bn_kernel(a_ref, w_ref, s_ref, b_ref, o_ref, *, relu):
    """bf16 im2col GEMM (f32 acc) + folded BatchNorm + optional ReLU."""
    y = jnp.dot(a_ref[...], w_ref[...], preferred_element_type=jnp.float32)
    y = y * s_ref[...] + b_ref[...]
    if relu:
        y = jnp.maximum(y, 0.0)
    o_ref[...] = y


def mm_bn_res_kernel(a_ref, w_ref, s_ref, b_ref, r_ref, o_ref, *, relu):
    """bf16 im2col GEMM (f32 acc) + folded BN + residual add + optional ReLU."""
    y = jnp.dot(a_ref[...], w_ref[...], preferred_element_type=jnp.float32)
    y = y * s_ref[...] + b_ref[...] + r_ref[...]
    if relu:
        y = jnp.maximum(y, 0.0)
    o_ref[...] = y


def maxpool_kernel(p_ref, o_ref):
    """3x3 max pool as 9 element-wise maxima over (TILE_M, LANE) slices (VPU)."""
    m = jnp.maximum(p_ref[0], p_ref[1])
    for t in range(2, 9):
        m = jnp.maximum(m, p_ref[t])
    o_ref[...] = m


def head_kernel(x_ref, w_ref, b_ref, o_ref):
    """Adaptive avg-pool (mean over spatial) + Linear, fused."""
    pooled = jnp.mean(x_ref[...], axis=1)                       # (N, LANE)
    o_ref[...] = jnp.dot(pooled, w_ref[...],
                         preferred_element_type=jnp.float32) + b_ref[...]


# ---------------------------- pallas_call wrappers ---------------------------

def conv_gemm(a, w, scale, shift, res=None, relu=True, tile_m=DEF_TILE_M):
    """M-tiled im2col GEMM with folded BN (+ optional residual) + ReLU.

    a:            (M, Kp)   bf16 patches, K zero-padded to a multiple of 128
    w:            (Kp, 128) bf16 weights, Cout zero-padded 64 -> 128
    scale, shift: (1, 128)  f32 folded BatchNorm
    res:          optional (M, 128) f32 residual added before the ReLU
    returns       (M, 128)  f32
    """
    M, Kp = a.shape
    Cout = w.shape[1]
    tm = min(tile_m, _round_up(M, 8))
    Mp = _round_up(M, tm)
    if Mp != M:
        a = jnp.pad(a, ((0, Mp - M), (0, 0)))
        if res is not None:
            res = jnp.pad(res, ((0, Mp - M), (0, 0)))

    in_specs = [
        pl.BlockSpec((tm, Kp), lambda i: (i, 0)),       # patches tile
        pl.BlockSpec((Kp, Cout), lambda i: (0, 0)),     # full weight
        pl.BlockSpec((1, Cout), lambda i: (0, 0)),      # bn scale
        pl.BlockSpec((1, Cout), lambda i: (0, 0)),      # bn shift
    ]
    args = [a, w, scale, shift]
    if res is not None:
        in_specs.append(pl.BlockSpec((tm, Cout), lambda i: (i, 0)))
        args.append(res)
        kern = functools.partial(mm_bn_res_kernel, relu=relu)
    else:
        kern = functools.partial(mm_bn_kernel, relu=relu)

    # VMEM budget derived from the tiles (2x for double-buffering) + headroom,
    # floored at the v6e default scope and capped at v7x's 64 MiB physical.
    per_step = (tm * Kp * 2 + Kp * Cout * 2 + 2 * Cout * 4 + tm * Cout * 4
                + (tm * Cout * 4 if res is not None else 0))
    vmem_limit = int(min(64 << 20, max(32 << 20, 2 * per_step + (8 << 20))))

    bytes_accessed = (Mp * Kp * 2 + Kp * Cout * 2 + 2 * Cout * 4
                      + Mp * Cout * 4 + (Mp * Cout * 4 if res is not None else 0))
    cost = pl.CostEstimate(flops=int(2 * Mp * Kp * Cout), transcendentals=0,
                           bytes_accessed=int(bytes_accessed))

    out = pl.pallas_call(
        kern,
        out_shape=jax.ShapeDtypeStruct((Mp, Cout), jnp.float32),
        grid=(Mp // tm,),
        in_specs=in_specs,
        out_specs=pl.BlockSpec((tm, Cout), lambda i: (i, 0)),
        compiler_params=pltpu.CompilerParams(
            dimension_semantics=("parallel",),     # shard M tiles over v7x's 2 TCs
            vmem_limit_bytes=vmem_limit),
        cost_estimate=cost,
    )(*args)
    return out[:M] if Mp != M else out


def maxpool_call(pool_in, tile_m=512):
    """pool_in: (9, M, LANE) f32 shifted window slices -> (M, LANE) f32 max."""
    _, M, C = pool_in.shape
    tm = min(tile_m, _round_up(M, 8))
    Mp = _round_up(M, tm)
    if Mp != M:
        pool_in = jnp.pad(pool_in, ((0, 0), (0, Mp - M), (0, 0)))
    per_step = 9 * tm * C * 4 + tm * C * 4
    vmem_limit = int(min(64 << 20, max(32 << 20, 2 * per_step + (8 << 20))))
    out = pl.pallas_call(
        maxpool_kernel,
        out_shape=jax.ShapeDtypeStruct((Mp, C), jnp.float32),
        grid=(Mp // tm,),
        in_specs=[pl.BlockSpec((9, tm, C), lambda i: (0, i, 0))],
        out_specs=pl.BlockSpec((tm, C), lambda i: (i, 0)),
        compiler_params=pltpu.CompilerParams(
            dimension_semantics=("parallel",),
            vmem_limit_bytes=vmem_limit),
    )(pool_in)
    return out[:M] if Mp != M else out


def head_call(feat, fc_wT, fc_b):
    """feat (N, S, LANE) f32, fc_wT (LANE, n_out_p), fc_b (1, n_out_p)."""
    N, S, C = feat.shape
    n_out_p = fc_wT.shape[1]
    return pl.pallas_call(
        head_kernel,
        out_shape=jax.ShapeDtypeStruct((N, n_out_p), jnp.float32),
        grid=(1,),
        in_specs=[
            pl.BlockSpec((N, S, C), lambda i: (0, 0, 0)),
            pl.BlockSpec((C, n_out_p), lambda i: (0, 0)),
            pl.BlockSpec((1, n_out_p), lambda i: (0, 0)),
        ],
        out_specs=pl.BlockSpec((N, n_out_p), lambda i: (0, 0)),
        compiler_params=pltpu.CompilerParams(
            dimension_semantics=("arbitrary",)),
    )(feat, fc_wT, fc_b)


# ---------------------------- JAX glue ---------------------------------------

def shifted_windows(x_nhwc, kh, kw, stride, pad, pad_value=0.0):
    """Return the kh*kw spatially shifted strided views of x (layout glue)."""
    N, H, W, C = x_nhwc.shape
    xp = jnp.pad(x_nhwc, ((0, 0), (pad, pad), (pad, pad), (0, 0)),
                 constant_values=pad_value)
    OH = (H + 2 * pad - kh) // stride + 1
    OW = (W + 2 * pad - kw) // stride + 1
    wins = [xp[:, i:i + stride * OH:stride, j:j + stride * OW:stride, :]
            for i in range(kh) for j in range(kw)]
    return wins, OH, OW


def fold_conv_bn(w_pt, gamma, beta, mean, var):
    """PyTorch conv weight (Cout,Cin,KH,KW) -> bf16 GEMM weight (Kp, LANE)
    (K padded to a multiple of 128, Cout zero-padded to LANE) plus the folded
    f32 BN scale/shift (LANE-padded with zeros so padded channels stay 0)."""
    Cout, Cin, KH, KW = w_pt.shape
    K = KH * KW * Cin
    Kp = _round_up(K, 128)
    wm = jnp.transpose(w_pt, (2, 3, 1, 0)).reshape(K, Cout)
    wm = jnp.pad(wm, ((0, Kp - K), (0, LANE - Cout)))
    scale = gamma / jnp.sqrt(var + EPS)
    shift = beta - mean * scale
    scale = jnp.pad(scale, (0, LANE - Cout)).reshape(1, LANE).astype(jnp.float32)
    shift = jnp.pad(shift, (0, LANE - Cout)).reshape(1, LANE).astype(jnp.float32)
    return wm.astype(jnp.bfloat16), scale, shift, K, Kp


def conv_bn_act(x_nhwc, w_pt, gamma, beta, mean, var, stride, pad,
                relu=True, res=None):
    """conv (no bias) + folded BN (+ residual) + ReLU via bf16 im2col GEMM."""
    N = x_nhwc.shape[0]
    KH, KW = int(w_pt.shape[2]), int(w_pt.shape[3])
    wins, OH, OW = shifted_windows(x_nhwc.astype(jnp.bfloat16), KH, KW,
                                   stride, pad, pad_value=0.0)
    a = jnp.stack(wins, axis=3).reshape(N * OH * OW, -1)   # (M, K) bf16
    wm, scale, shift, K, Kp = fold_conv_bn(w_pt, gamma, beta, mean, var)
    if Kp != K:
        a = jnp.pad(a, ((0, 0), (0, Kp - K)))
    y = conv_gemm(a, wm, scale, shift, res=res, relu=relu)
    return y.reshape(N, OH, OW, LANE), OH, OW


def resnet18nano_forward(x_nchw, p):
    x = jnp.transpose(x_nchw, (0, 2, 3, 1)).astype(jnp.float32)   # NCHW -> NHWC
    N = x.shape[0]

    # conv1 7x7/2 p3 + bn1 + relu (bf16 GEMM, M-tiled, Cout lane-padded to 128)
    y, OH, OW = conv_bn_act(x, p["conv1_w"], p["bn1_g"], p["bn1_b"],
                            p["bn1_m"], p["bn1_v"], stride=2, pad=3, relu=True)

    # maxpool 3x3/2 p1: VPU element-wise max over 9 lane-dense shifted slices
    wins, MH, MW = shifted_windows(y, 3, 3, 2, 1, pad_value=-jnp.inf)
    pool_in = jnp.stack(wins, axis=0).reshape(9, N * MH * MW, LANE)
    x0 = maxpool_call(pool_in).reshape(N, MH, MW, LANE)           # f32 residual

    # layer1: one BasicBlock (conv3x3+bn+relu, conv3x3+bn, +identity, relu)
    h, BH, BW = conv_bn_act(x0[..., :64], p["blk_conv1_w"],
                            p["blk_bn1_g"], p["blk_bn1_b"],
                            p["blk_bn1_m"], p["blk_bn1_v"],
                            stride=1, pad=1, relu=True)
    res = x0.reshape(N * BH * BW, LANE)                           # identity (f32)
    o, _, _ = conv_bn_act(h[..., :64], p["blk_conv2_w"],
                          p["blk_bn2_g"], p["blk_bn2_b"],
                          p["blk_bn2_m"], p["blk_bn2_v"],
                          stride=1, pad=1, relu=True, res=res)

    # adaptive avgpool(1,1) + flatten + fc   (fused Pallas head, lane-padded)
    n_out = p["fc_w"].shape[0]
    n_out_p = _round_up(n_out, LANE)
    fc_wT = jnp.pad(jnp.transpose(p["fc_w"]).astype(jnp.float32),
                    ((0, LANE - 64), (0, n_out_p - n_out)))
    fc_b = jnp.pad(p["fc_b"], (0, n_out_p - n_out)).reshape(1, n_out_p)
    out = head_call(o.reshape(N, BH * BW, LANE), fc_wT, fc_b)
    return out[:, :n_out]


# ---------------------------- reference (pure JAX, f32) -----------------------

def reference_forward(x_nchw, p):
    x = jnp.transpose(x_nchw, (0, 2, 3, 1)).astype(jnp.float32)

    def conv(x, w, stride, pad):
        return lax.conv_general_dilated(
            x, jnp.transpose(w, (2, 3, 1, 0)),
            window_strides=(stride, stride), padding=[(pad, pad), (pad, pad)],
            dimension_numbers=("NHWC", "HWIO", "NHWC"))

    def bn(x, g, b, m, v):
        return (x - m) / jnp.sqrt(v + EPS) * g + b

    y = jax.nn.relu(bn(conv(x, p["conv1_w"], 2, 3),
                       p["bn1_g"], p["bn1_b"], p["bn1_m"], p["bn1_v"]))
    y = lax.reduce_window(y, -jnp.inf, lax.max, (1, 3, 3, 1), (1, 2, 2, 1),
                          [(0, 0), (1, 1), (1, 1), (0, 0)])
    h = jax.nn.relu(bn(conv(y, p["blk_conv1_w"], 1, 1),
                       p["blk_bn1_g"], p["blk_bn1_b"],
                       p["blk_bn1_m"], p["blk_bn1_v"]))
    o = bn(conv(h, p["blk_conv2_w"], 1, 1),
           p["blk_bn2_g"], p["blk_bn2_b"], p["blk_bn2_m"], p["blk_bn2_v"])
    o = jax.nn.relu(o + y)
    pooled = jnp.mean(o, axis=(1, 2))
    return pooled @ p["fc_w"].T + p["fc_b"]


# ---------------------------- parameters -------------------------------------

def init_params(key, n_channels, n_outputs):
    ks = jax.random.split(key, 8)

    def xavier(k, shape, fan_in, fan_out):
        std = math.sqrt(2.0 / (fan_in + fan_out))
        return std * jax.random.normal(k, shape, jnp.float32)

    p = {}
    p["conv1_w"] = xavier(ks[0], (64, n_channels, 7, 7), n_channels * 49, 64 * 49)
    p["blk_conv1_w"] = xavier(ks[1], (64, 64, 3, 3), 64 * 9, 64 * 9)
    p["blk_conv2_w"] = xavier(ks[2], (64, 64, 3, 3), 64 * 9, 64 * 9)
    for name, k in (("bn1", ks[3]), ("blk_bn1", ks[4]), ("blk_bn2", ks[5])):
        p[name + "_g"] = 1.0 + 0.02 * jax.random.normal(k, (64,), jnp.float32)
        p[name + "_b"] = jnp.zeros((64,), jnp.float32)
        p[name + "_m"] = jnp.zeros((64,), jnp.float32)   # running mean
        p[name + "_v"] = jnp.ones((64,), jnp.float32)    # running var
    p["fc_w"] = xavier(ks[6], (n_outputs, 64), 64, n_outputs)
    p["fc_b"] = jax.random.normal(ks[7], (n_outputs,), jnp.float32)
    return p


# ---------------------------- main --------------------------------------------

if __name__ == "__main__":
    key = jax.random.PRNGKey(0)
    kx, kp = jax.random.split(key)
    n_channels, n_outputs = 4, 8
    x = jax.random.normal(kx, (2, n_channels, 16, 16), jnp.float32)   # NCHW
    params = init_params(kp, n_channels, n_outputs)

    out = resnet18nano_forward(x, params)
    out = jax.block_until_ready(out)

    ref = reference_forward(x, params)
    # bf16 GEMM operands with f32 accumulation/epilogue -> loosened tolerance.
    np.testing.assert_allclose(np.asarray(out), np.asarray(ref),
                               rtol=2e-2, atol=2e-2)
    print("KERNEL_OK")
</pallas_src>

<mosaic_0001>
module attributes {stable_mosaic.version = 11 : i64} {
  func.func @mm_bn_kernel(%arg0: i32, %arg1: memref<128x256xbf16, #tpu.memory_space<vmem>>, %arg2: memref<256x128xbf16, #tpu.memory_space<vmem>>, %arg3: memref<1x128xf32, #tpu.memory_space<vmem>>, %arg4: memref<1x128xf32, #tpu.memory_space<vmem>>, %arg5: memref<128x128xf32, #tpu.memory_space<vmem>>) attributes {dimension_semantics = [#tpu.dimension_semantics<parallel>], iteration_bounds = array<i64: 1>, scalar_prefetch = 0 : i64, scratch_operands = 0 : i64, tpu.core_type = #tpu.core_type<tc>, window_params = [{transform_indices = @transform_0, window_bounds = array<i64: 128, 256>}, {pipeline_mode = #tpu.pipeline_mode<synchronous>, transform_indices = @transform_1, window_bounds = array<i64: 256, 128>}, {pipeline_mode = #tpu.pipeline_mode<synchronous>, transform_indices = @transform_2, window_bounds = array<i64: 1, 128>}, {pipeline_mode = #tpu.pipeline_mode<synchronous>, transform_indices = @transform_3, window_bounds = array<i64: 1, 128>}, {transform_indices = @transform_4, window_bounds = array<i64: 128, 128>}]} {
    %c0 = arith.constant 0 : index
    %c0_0 = arith.constant 0 : index
    %0 = vector.load %arg1[%c0, %c0_0] : memref<128x256xbf16, #tpu.memory_space<vmem>>, vector<128x256xbf16>
    %c0_1 = arith.constant 0 : index
    %c0_2 = arith.constant 0 : index
    %1 = vector.load %arg2[%c0_1, %c0_2] : memref<256x128xbf16, #tpu.memory_space<vmem>>, vector<256x128xbf16>
    %cst = arith.constant dense<0.000000e+00> : vector<128x128xf32>
    %2 = tpu.matmul %0, %1, %cst {dimension_numbers = #tpu.dot_dimension_numbers<[1], [0], [0], [1], [0, 0, 1, 1], [], []>} : vector<128x256xbf16>, vector<256x128xbf16>, vector<128x128xf32> -> vector<128x128xf32>
    %c0_3 = arith.constant 0 : index
    %c0_4 = arith.constant 0 : index
    %3 = vector.load %arg3[%c0_3, %c0_4] : memref<1x128xf32, #tpu.memory_space<vmem>>, vector<1x128xf32>
    %4 = vector.broadcast %3 : vector<1x128xf32> to vector<128x128xf32>
    %5 = arith.mulf %2, %4 : vector<128x128xf32>
    %c0_5 = arith.constant 0 : index
    %c0_6 = arith.constant 0 : index
    %6 = vector.load %arg4[%c0_5, %c0_6] : memref<1x128xf32, #tpu.memory_space<vmem>>, vector<1x128xf32>
    %7 = vector.broadcast %6 : vector<1x128xf32> to vector<128x128xf32>
    %8 = arith.addf %5, %7 : vector<128x128xf32>
    %cst_7 = arith.constant 0.000000e+00 : f32
    %9 = vector.broadcast %cst_7 : f32 to vector<128x128xf32>
    %10 = arith.maximumf %8, %9 : vector<128x128xf32>
    %c0_8 = arith.constant 0 : index
    %c0_9 = arith.constant 0 : index
    %11 = vector.load %arg5[%c0_8, %c0_9] : memref<128x128xf32, #tpu.memory_space<vmem>>, vector<128x128xf32>
    tpu.vector_store %arg5[%c0_8, %c0_9], %10 {strides = array<i32>} : memref<128x128xf32, #tpu.memory_space<vmem>>, vector<128x128xf32>,
    return
  }
  func.func @transform_0(%arg0: i32) -> (i32, i32) {
    %c0_i32 = arith.constant 0 : i32
    %c0_i32_0 = arith.constant 0 : i32
    return %arg0, %c0_i32 : i32, i32
  }
  func.func @transform_1(%arg0: i32) -> (i32, i32) {
    %c0_i32 = arith.constant 0 : i32
    %c0_i32_0 = arith.constant 0 : i32
    %c0_i32_1 = arith.constant 0 : i32
    return %c0_i32, %c0_i32_0 : i32, i32
  }
  func.func @transform_2(%arg0: i32) -> (i32, i32) {
    %c0_i32 = arith.constant 0 : i32
    %c0_i32_0 = arith.constant 0 : i32
    %c0_i32_1 = arith.constant 0 : i32
    return %c0_i32, %c0_i32_0 : i32, i32
  }
  func.func @transform_3(%arg0: i32) -> (i32, i32) {
    %c0_i32 = arith.constant 0 : i32
    %c0_i32_0 = arith.constant 0 : i32
    %c0_i32_1 = arith.constant 0 : i32
    return %c0_i32, %c0_i32_0 : i32, i32
  }
  func.func @transform_4(%arg0: i32) -> (i32, i32) {
    %c0_i32 = arith.constant 0 : i32
    %c0_i32_0 = arith.constant 0 : i32
    return %arg0, %c0_i32 : i32, i32
  }
}

</mosaic_0001>

<llo_original>
// kernel: tpu_custom_call.1
$region0: #{tpu_custom_call.1}
  #allocation0 [shape = 'u32[]', space=smem, size = 0x4, offset = 0x4, fixed_abs, tag = 'smem constant byte address 0x4 - core index']
  #allocation1 [shape = 'u32[72,128]{1,0:T(1,128)}', space=vmem, size = 0x9000, scoped, tag = 'internal scratch']
  %s0 = inlined_call_operand.hbm [shape: bf16[128,256], index: 0, kind: input, shape index: {}]
  %s1 = inlined_call_operand.hbm [shape: bf16[256,128], index: 1, kind: input, shape index: {}]
  %s2 = inlined_call_operand.vmem [shape: f32[1,128], index: 2, kind: input, shape index: {}]
  %s3 = inlined_call_operand.vmem [shape: f32[1,128], index: 3, kind: input, shape index: {}]
  %s4 = inlined_call_operand.hbm [shape: f32[128,128], index: 4, kind: output, shape index: {}]
  %s5 = sld [smem:[#allocation0]]
  $region34: #{tpu_custom_call.1} parent=0
    _
  %s7 = ssub.s32 1, %s5
  %s8 = scalar_select 0, %s7, %s5
  $region1: #{tpu_custom_call.1} parent=0
    #allocation2 [shape = 'u8[65536]{0}', space=vmem, size = 0x10000, scoped, tag = 'input window, operand 0, single buffered']
    #allocation3 [shape = 's32[1]{0}', space=sflag, size = 0x4, scoped, tag = 'scoped memory for tpu_custom_call.1']
    #allocation4 [shape = 's32[1]{0}', space=sflag, size = 0x4, scoped, tag = 'scoped memory for tpu_custom_call.1']
    #allocation5 [shape = 'u8[65536]{0}', space=vmem, size = 0x10000, scoped, tag = 'input window, operand 1, single buffered']
    #allocation6 [shape = 's32[1]{0}', space=sflag, size = 0x4, scoped, tag = 'scoped memory for tpu_custom_call.1']
    #allocation7 [shape = 'u8[65536]{0}', space=vmem, size = 0x10000, scoped, tag = 'output window, operand 0, single buffered']
    %9 = vsyncpa [#allocation3], 0
    %10 = vsyncpa [#allocation6], 0
    %11 = vsyncpa [#allocation4], 0
    // Predicated region
    $region2: #{tpu_custom_call.1} parent=1 // pred_check
      _
    $region3: #{tpu_custom_call.1} parent=1 // pred_check_branch
      %13 = sbr.rel (0) target = $region5
    $region4: #{tpu_custom_call.1} parent=1 // pred_region
      %15 = vsyncadd [#allocation3], 0
      %s16 = sshll.u32 %s0, 4
      %s17 = int_to_ptr.hbm [resolvable:$true] %s16
      %s18 = sshll.u32 [#allocation2], 4
      %s19 = int_to_ptr.vmem [resolvable:$true] %s18
      %24 = dma.hbm_to_vmem [thread:$0]  %s17, 2048, %s19, [#allocation3], 128, 128, 8
    $region5: #{tpu_custom_call.1} parent=1 // pred_fallthru
      _
    // Predicated region
    $region6: #{tpu_custom_call.1} parent=1 // pred_check
      _
    $region7: #{tpu_custom_call.1} parent=1 // pred_check_branch
      %26 = sbr.rel (0) target = $region9
    $region8: #{tpu_custom_call.1} parent=1 // pred_region
      %28 = vsyncadd [#allocation6], 0
      %s29 = sshll.u32 %s1, 4
      %s30 = int_to_ptr.hbm [resolvable:$true] %s29
      %s31 = sshll.u32 [#allocation5], 4
      %s32 = int_to_ptr.vmem [resolvable:$true] %s31
      %37 = dma.hbm_to_vmem [thread:$0]  %s30, 2048, %s32, [#allocation6], 64, 64, 4
    $region9: #{tpu_custom_call.1} parent=1 // pred_fallthru
      _
    // Predicated region
    $region10: #{tpu_custom_call.1} parent=1 // pred_check
      _
    $region11: #{tpu_custom_call.1} parent=1 // pred_check_branch
      %39 = sbr.rel (0) target = $region13
    $region12: #{tpu_custom_call.1} parent=1 // pred_region
      _
    $region13: #{tpu_custom_call.1} parent=1 // pred_fallthru
      _
    // Predicated region
    $region14: #{tpu_custom_call.1} parent=1 // pred_check
      _
    $region15: #{tpu_custom_call.1} parent=1 // pred_check_branch
      %41 = sbr.rel (0) target = $region17
    $region16: #{tpu_custom_call.1} parent=1 // pred_region
      _
    $region17: #{tpu_custom_call.1} parent=1 // pred_fallthru
      _
    // Predicated region
    $region18: #{tpu_custom_call.1} parent=1 // pred_check
      _
    $region19: #{tpu_custom_call.1} parent=1 // pred_check_branch
      %43 = sbr.rel (0) target = $region21
    $region20: #{tpu_custom_call.1} parent=1 // pred_region
      %45 = dma.done [#allocation3], 2048
    $region21: #{tpu_custom_call.1} parent=1 // pred_fallthru
      _
    // Predicated region
    $region22: #{tpu_custom_call.1} parent=1 // pred_check
      _
    $region23: #{tpu_custom_call.1} parent=1 // pred_check_branch
      %47 = sbr.rel (0) target = $region25
    $region24: #{tpu_custom_call.1} parent=1 // pred_region
      %49 = dma.done [#allocation6], 2048
    $region25: #{tpu_custom_call.1} parent=1 // pred_fallthru
      _
    %v50 = vld [vmem:[#allocation2] sm:$0xff]
    %v51 = vld [vmem:[#allocation2 + $0x8] sm:$0xff]
    %v52 = vld [vmem:[#allocation2 + $0x10] sm:$0xff]
    %v53 = vld [vmem:[#allocation2 + $0x18] sm:$0xff]
    %v54 = vld [vmem:[#allocation2 + $0x20] sm:$0xff]
    %v55 = vld [vmem:[#allocation2 + $0x28] sm:$0xff]
    %v56 = vld [vmem:[#allocation2 + $0x30] sm:$0xff]
    %v57 = vld [vmem:[#allocation2 + $0x38] sm:$0xff]
    %v58 = vld [vmem:[#allocation2 + $0x40] sm:$0xff]
    %v59 = vld [vmem:[#allocation2 + $0x48] sm:$0xff]
    %v60 = vld [vmem:[#allocation2 + $0x50] sm:$0xff]
    %v61 = vld [vmem:[#allocation2 + $0x58] sm:$0xff]
    %v62 = vld [vmem:[#allocation2 + $0x60] sm:$0xff]
    %v63 = vld [vmem:[#allocation2 + $0x68] sm:$0xff]
    %v64 = vld [vmem:[#allocation2 + $0x70] sm:$0xff]
    %v65 = vld [vmem:[#allocation2 + $0x78] sm:$0xff]
    %v66 = vld [vmem:[#allocation5] sm:$0xf]
    %v67 = vld [vmem:[#allocation5 + $0x4] sm:$0xf]
    %v68 = vld [vmem:[#allocation5 + $0x8] sm:$0xf]
    %v69 = vld [vmem:[#allocation5 + $0xc] sm:$0xf]
    %v70 = vld [vmem:[#allocation5 + $0x10] sm:$0xf]
    %v71 = vld [vmem:[#allocation5 + $0x14] sm:$0xf]
    %v72 = vld [vmem:[#allocation5 + $0x18] sm:$0xf]
    %v73 = vld [vmem:[#allocation5 + $0x1c] sm:$0xf]
    %v74 = vld [vmem:[#allocation5 + $0x20] sm:$0xf]
    %v75 = vld [vmem:[#allocation5 + $0x24] sm:$0xf]
    %v76 = vld [vmem:[#allocation5 + $0x28] sm:$0xf]
    %v77 = vld [vmem:[#allocation5 + $0x2c] sm:$0xf]
    %v78 = vld [vmem:[#allocation5 + $0x30] sm:$0xf]
    %v79 = vld [vmem:[#allocation5 + $0x34] sm:$0xf]
    %v80 = vld [vmem:[#allocation5 + $0x38] sm:$0xf]
    %v81 = vld [vmem:[#allocation5 + $0x3c] sm:$0xf]
    %v82 = vld [vmem:[#allocation5 + $0x40] sm:$0xf]
    %v83 = vld [vmem:[#allocation5 + $0x44] sm:$0xf]
    %v84 = vld [vmem:[#allocation5 + $0x48] sm:$0xf]
    %v85 = vld [vmem:[#allocation5 + $0x4c] sm:$0xf]
    %v86 = vld [vmem:[#allocation5 + $0x50] sm:$0xf]
    %v87 = vld [vmem:[#allocation5 + $0x54] sm:$0xf]
    %v88 = vld [vmem:[#allocation5 + $0x58] sm:$0xf]
    %v89 = vld [vmem:[#allocation5 + $0x5c] sm:$0xf]
    %v90 = vld [vmem:[#allocation5 + $0x60] sm:$0xf]
    %v91 = vld [vmem:[#allocation5 + $0x64] sm:$0xf]
    %v92 = vld [vmem:[#allocation5 + $0x68] sm:$0xf]
    %v93 = vld [vmem:[#allocation5 + $0x6c] sm:$0xf]
    %v94 = vld [vmem:[#allocation5 + $0x70] sm:$0xf]
    %v95 = vld [vmem:[#allocation5 + $0x74] sm:$0xf]
    %v96 = vld [vmem:[#allocation5 + $0x78] sm:$0xf]
    %v97 = vld [vmem:[#allocation5 + $0x7c] sm:$0xf]
    %v114 = vunpack.c.l.b16 %v50
    %v115 = vunpack.c.h.b16 %v50
    %v116 = vunpack.c.l.b16 %v51
    %v117 = vunpack.c.h.b16 %v51
    %v118 = vunpack.c.l.b16 %v52
    %v119 = vunpack.c.h.b16 %v52
    %v120 = vunpack.c.l.b16 %v53
    %v121 = vunpack.c.h.b16 %v53
    %v122 = vunpack.c.l.b16 %v54
    %v123 = vunpack.c.h.b16 %v54
    %v124 = vunpack.c.l.b16 %v55
    %v125 = vunpack.c.h.b16 %v55
    %v126 = vunpack.c.l.b16 %v56
    %v127 = vunpack.c.h.b16 %v56
    %v128 = vunpack.c.l.b16 %v57
    %v129 = vunpack.c.h.b16 %v57
    %v130 = vunpack.c.l.b16 %v58
    %v131 = vunpack.c.h.b16 %v58
    %v132 = vunpack.c.l.b16 %v59
    %v133 = vunpack.c.h.b16 %v59
    %v134 = vunpack.c.l.b16 %v60
    %v135 = vunpack.c.h.b16 %v60
    %v136 = vunpack.c.l.b16 %v61
    %v137 = vunpack.c.h.b16 %v61
    %v138 = vunpack.c.l.b16 %v62
    %v139 = vunpack.c.h.b16 %v62
    %v140 = vunpack.c.l.b16 %v63
    %v141 = vunpack.c.h.b16 %v63
    %v142 = vunpack.c.l.b16 %v64
    %v143 = vunpack.c.h.b16 %v64
    %v144 = vunpack.c.l.b16 %v65
    %v145 = vunpack.c.h.b16 %v65
    %v146 = vpack.c.b16 %v116, %v114
    %v147 = vpack.c.b16 %v117, %v115
    %v148 = vpack.c.b16 %v120, %v118
    %v149 = vpack.c.b16 %v121, %v119
    %v150 = vpack.c.b16 %v124, %v122
    %v151 = vpack.c.b16 %v125, %v123
    %v152 = vpack.c.b16 %v128, %v126
    %v153 = vpack.c.b16 %v129, %v127
    %v154 = vpack.c.b16 %v132, %v130
    %v155 = vpack.c.b16 %v133, %v131
    %v156 = vpack.c.b16 %v136, %v134
    %v157 = vpack.c.b16 %v137, %v135
    %v158 = vpack.c.b16 %v140, %v138
    %v159 = vpack.c.b16 %v141, %v139
    %v160 = vpack.c.b16 %v144, %v142
    %v161 = vpack.c.b16 %v145, %v143
    %v210 = vunpack.c.l.b16 %v66
    %v211 = vunpack.c.l.b16 %v67
    %v212 = vunpack.c.l.b16 %v68
    %v213 = vunpack.c.l.b16 %v69
    %v214 = vunpack.c.l.b16 %v70
    %v215 = vunpack.c.l.b16 %v71
    %v216 = vunpack.c.l.b16 %v72
    %v217 = vunpack.c.l.b16 %v73
    %v218 = vunpack.c.l.b16 %v74
    %v219 = vunpack.c.l.b16 %v75
    %v220 = vunpack.c.l.b16 %v76
    %v221 = vunpack.c.l.b16 %v77
    %v222 = vunpack.c.l.b16 %v78
    %v223 = vunpack.c.l.b16 %v79
    %v224 = vunpack.c.l.b16 %v80
    %v225 = vunpack.c.l.b16 %v81
    %v226 = vunpack.c.l.b16 %v82
    %v227 = vunpack.c.l.b16 %v83
    %v228 = vunpack.c.l.b16 %v84
    %v229 = vunpack.c.l.b16 %v85
    %v230 = vunpack.c.l.b16 %v86
    %v231 = vunpack.c.l.b16 %v87
    %v232 = vunpack.c.l.b16 %v88
    %v233 = vunpack.c.l.b16 %v89
    %v234 = vunpack.c.l.b16 %v90
    %v235 = vunpack.c.l.b16 %v91
    %v236 = vunpack.c.l.b16 %v92
    %v237 = vunpack.c.l.b16 %v93
    %v238 = vunpack.c.l.b16 %v94
    %v239 = vunpack.c.l.b16 %v95
    %v240 = vunpack.c.l.b16 %v96
    %v241 = vunpack.c.l.b16 %v97
    %v242 = vpack.c.b16 %v211, %v210
    %v243 = vpack.c.b16 %v213, %v212
    %v244 = vpack.c.b16 %v215, %v214
    %v245 = vpack.c.b16 %v217, %v216
    %v246 = vpack.c.b16 %v219, %v218
    %v247 = vpack.c.b16 %v221, %v220
    %v248 = vpack.c.b16 %v223, %v222
    %v249 = vpack.c.b16 %v225, %v224
    %v250 = vpack.c.b16 %v227, %v226
    %v251 = vpack.c.b16 %v229, %v228
    %v252 = vpack.c.b16 %v231, %v230
    %v253 = vpack.c.b16 %v233, %v232
    %v254 = vpack.c.b16 %v235, %v234
    %v255 = vpack.c.b16 %v237, %v236
    %v256 = vpack.c.b16 %v239, %v238
    %v257 = vpack.c.b16 %v241, %v240
    %274 = vmatpush.bf16.msra.mxu0 %v249
    %275 = vmatpush.bf16.msra.mxu0 %v248
    %276 = vmatpush.bf16.msra.mxu0 %v247
    %277 = vmatpush.bf16.msra.mxu0 %v246
    %278 = vmatpush.bf16.msra.mxu0 %v245
    %279 = vmatpush.bf16.msra.mxu0 %v244
    %280 = vmatpush.bf16.msra.mxu0 %v243
    %281 = vmatpush.bf16.msra.mxu0 %v242
    %282 = vmatmul.bf16.gmra.mxu0 %v146
    %v283 = vpop.f32.mrf.mxu0
    %v284 = vadd.f32 0.0, %v283
    %v285 = vpop.f32.mrf.mxu0
    %v286 = vadd.f32 0.0, %v285
    %287 = vmatmul.bf16.gmra.mxu0 %v148
    %v288 = vpop.f32.mrf.mxu0
    %v289 = vadd.f32 0.0, %v288
    %v290 = vpop.f32.mrf.mxu0
    %v291 = vadd.f32 0.0, %v290
    %292 = vmatmul.bf16.gmra.mxu0 %v150
    %v293 = vpop.f32.mrf.mxu0
    %v294 = vadd.f32 0.0, %v293
    %v295 = vpop.f32.mrf.mxu0
    %v296 = vadd.f32 0.0, %v295
    %297 = vmatmul.bf16.gmra.mxu0 %v152
    %v298 = vpop.f32.mrf.mxu0
    %v299 = vadd.f32 0.0, %v298
    %v300 = vpop.f32.mrf.mxu0
    %v301 = vadd.f32 0.0, %v300
    %302 = vmatmul.bf16.gmra.mxu0 %v154
    %v303 = vpop.f32.mrf.mxu0
    %v304 = vadd.f32 0.0, %v303
    %v305 = vpop.f32.mrf.mxu0
    %v306 = vadd.f32 0.0, %v305
    %307 = vmatmul.bf16.gmra.mxu0 %v156
    %v308 = vpop.f32.mrf.mxu0
    %v309 = vadd.f32 0.0, %v308
    %v310 = vpop.f32.mrf.mxu0
    %v311 = vadd.f32 0.0, %v310
    %312 = vmatmul.bf16.gmra.mxu0 %v158
    %v313 = vpop.f32.mrf.mxu0
    %v314 = vadd.f32 0.0, %v313
    %v315 = vpop.f32.mrf.mxu0
    %v316 = vadd.f32 0.0, %v315
    %317 = vmatmul.bf16.gmra.mxu0 %v160
    %v318 = vpop.f32.mrf.mxu0
    %v319 = vadd.f32 0.0, %v318
    %v320 = vpop.f32.mrf.mxu0
    %v321 = vadd.f32 0.0, %v320
    %322 = vdwg.mxu0
    %323 = vmatpush.bf16.msra.mxu0 %v257
    %324 = vmatpush.bf16.msra.mxu0 %v256
    %325 = vmatpush.bf16.msra.mxu0 %v255
    %326 = vmatpush.bf16.msra.mxu0 %v254
    %327 = vmatpush.bf16.msra.mxu0 %v253
    %328 = vmatpush.bf16.msra.mxu0 %v252
    %329 = vmatpush.bf16.msra.mxu0 %v251
    %330 = vmatpush.bf16.msra.mxu0 %v250
    %331 = vmatmul.bf16.gmra.mxu0 %v147
    %v332 = vpop.f32.mrf.mxu0
    %v333 = vadd.f32 %v284, %v332
    %v334 = vpop.f32.mrf.mxu0
    %v335 = vadd.f32 %v286, %v334
    %336 = vmatmul.bf16.gmra.mxu0 %v149
    %v337 = vpop.f32.mrf.mxu0
    %v338 = vadd.f32 %v289, %v337
    %v339 = vpop.f32.mrf.mxu0
    %v340 = vadd.f32 %v291, %v339
    %341 = vmatmul.bf16.gmra.mxu0 %v151
    %v342 = vpop.f32.mrf.mxu0
    %v343 = vadd.f32 %v294, %v342
    %v344 = vpop.f32.mrf.mxu0
    %v345 = vadd.f32 %v296, %v344
    %346 = vmatmul.bf16.gmra.mxu0 %v153
    %v347 = vpop.f32.mrf.mxu0
    %v348 = vadd.f32 %v299, %v347
    %v349 = vpop.f32.mrf.mxu0
    %v350 = vadd.f32 %v301, %v349
    %351 = vmatmul.bf16.gmra.mxu0 %v155
    %v352 = vpop.f32.mrf.mxu0
    %v353 = vadd.f32 %v304, %v352
    %v354 = vpop.f32.mrf.mxu0
    %v355 = vadd.f32 %v306, %v354
    %356 = vmatmul.bf16.gmra.mxu0 %v157
    %v357 = vpop.f32.mrf.mxu0
    %v358 = vadd.f32 %v309, %v357
    %v359 = vpop.f32.mrf.mxu0
    %v360 = vadd.f32 %v311, %v359
    %361 = vmatmul.bf16.gmra.mxu0 %v159
    %v362 = vpop.f32.mrf.mxu0
    %v363 = vadd.f32 %v314, %v362
    %v364 = vpop.f32.mrf.mxu0
    %v365 = vadd.f32 %v316, %v364
    %366 = vmatmul.bf16.gmra.mxu0 %v161
    %v367 = vpop.f32.mrf.mxu0
    %v368 = vadd.f32 %v319, %v367
    %v369 = vpop.f32.mrf.mxu0
    %v370 = vadd.f32 %v321, %v369
    %371 = vdwg.mxu0
    %v372 = vld [vmem:[%s2] sm:$0x1]
    %v374 = vperm.slane %v372, 0
    %v376 = vmul.f32 %v333, %v374
    %v377 = vmul.f32 %v335, %v374
    %v378 = vmul.f32 %v338, %v374
    %v379 = vmul.f32 %v340, %v374
    %v380 = vmul.f32 %v343, %v374
    %v381 = vmul.f32 %v345, %v374
    %v382 = vmul.f32 %v348, %v374
    %v383 = vmul.f32 %v350, %v374
    %v384 = vmul.f32 %v353, %v374
    %v385 = vmul.f32 %v355, %v374
    %v386 = vmul.f32 %v358, %v374
    %v387 = vmul.f32 %v360, %v374
    %v388 = vmul.f32 %v363, %v374
    %v389 = vmul.f32 %v365, %v374
    %v390 = vmul.f32 %v368, %v374
    %v391 = vmul.f32 %v370, %v374
    %v392 = vld [vmem:[%s3] sm:$0x1]
    %v394 = vperm.slane %v392, 0
    %v396 = vadd.f32 %v376, %v394
    %v397 = vadd.f32 %v377, %v394
    %v398 = vadd.f32 %v378, %v394
    %v399 = vadd.f32 %v379, %v394
    %v400 = vadd.f32 %v380, %v394
    %v401 = vadd.f32 %v381, %v394
    %v402 = vadd.f32 %v382, %v394
    %v403 = vadd.f32 %v383, %v394
    %v404 = vadd.f32 %v384, %v394
    %v405 = vadd.f32 %v385, %v394
    %v406 = vadd.f32 %v386, %v394
    %v407 = vadd.f32 %v387, %v394
    %v408 = vadd.f32 %v388, %v394
    %v409 = vadd.f32 %v389, %v394
    %v410 = vadd.f32 %v390, %v394
    %v411 = vadd.f32 %v391, %v394
    %v412 = vmax.f32 %v396, 0.0
    %v413 = vmax.f32 %v397, 0.0
    %v414 = vmax.f32 %v398, 0.0
    %v415 = vmax.f32 %v399, 0.0
    %v416 = vmax.f32 %v400, 0.0
    %v417 = vmax.f32 %v401, 0.0
    %v418 = vmax.f32 %v402, 0.0
    %v419 = vmax.f32 %v403, 0.0
    %v420 = vmax.f32 %v404, 0.0
    %v421 = vmax.f32 %v405, 0.0
    %v422 = vmax.f32 %v406, 0.0
    %v423 = vmax.f32 %v407, 0.0
    %v424 = vmax.f32 %v408, 0.0
    %v425 = vmax.f32 %v409, 0.0
    %v426 = vmax.f32 %v410, 0.0
    %v427 = vmax.f32 %v411, 0.0
    %428 = vst [vmem:[#allocation7] sm:$0xff] %v412
    %429 = vst [vmem:[#allocation7 + $0x8] sm:$0xff] %v413
    %430 = vst [vmem:[#allocation7 + $0x10] sm:$0xff] %v414
    %431 = vst [vmem:[#allocation7 + $0x18] sm:$0xff] %v415
    %432 = vst [vmem:[#allocation7 + $0x20] sm:$0xff] %v416
    %433 = vst [vmem:[#allocation7 + $0x28] sm:$0xff] %v417
    %434 = vst [vmem:[#allocation7 + $0x30] sm:$0xff] %v418
    %435 = vst [vmem:[#allocation7 + $0x38] sm:$0xff] %v419
    %436 = vst [vmem:[#allocation7 + $0x40] sm:$0xff] %v420
    %437 = vst [vmem:[#allocation7 + $0x48] sm:$0xff] %v421
    %438 = vst [vmem:[#allocation7 + $0x50] sm:$0xff] %v422
    %439 = vst [vmem:[#allocation7 + $0x58] sm:$0xff] %v423
    %440 = vst [vmem:[#allocation7 + $0x60] sm:$0xff] %v424
    %441 = vst [vmem:[#allocation7 + $0x68] sm:$0xff] %v425
    %442 = vst [vmem:[#allocation7 + $0x70] sm:$0xff] %v426
    %443 = vst [vmem:[#allocation7 + $0x78] sm:$0xff] %v427
    // Predicated region
    $region26: #{tpu_custom_call.1} parent=1 // pred_check
      _
    $region27: #{tpu_custom_call.1} parent=1 // pred_check_branch
      %445 = sbr.rel (0) target = $region29
    $region28: #{tpu_custom_call.1} parent=1 // pred_region
      %447 = vsyncadd [#allocation4], 0
      %s448 = sshll.u32 [#allocation7], 4
      %s449 = int_to_ptr.vmem [resolvable:$true] %s448
      %s450 = sshll.u32 %s4, 4
      %s451 = int_to_ptr.hbm [resolvable:$true] %s450
      %456 = dma.vmem_to_hbm [thread:$0]  %s449, 2048, %s451, [#allocation4], 128, 128, 8
    $region29: #{tpu_custom_call.1} parent=1 // pred_fallthru
      _
    // Predicated region
    $region30: #{tpu_custom_call.1} parent=1 // pred_check
      _
    $region31: #{tpu_custom_call.1} parent=1 // pred_check_branch
      %458 = sbr.rel (0) target = $region33
    $region32: #{tpu_custom_call.1} parent=1 // pred_region
      %460 = dma.done [#allocation4], 2048
    $region33: #{tpu_custom_call.1} parent=1 // pred_fallthru
      _
    %461 = vsyncpa [#allocation3], 1
    %462 = vsyncpa [#allocation6], 1
    %463 = vsyncpa [#allocation4], 1

</llo_original>
